<compile_context>
chip_gen: v5e
topology: v5e:2x2
jax: 0.10.0
libtpu: 0.0.40
codegen_flags: <defaults>
</compile_context>

<pallas_src>
import jax
import jax.numpy as jnp
from jax.experimental import pallas as pl
from jax.experimental.pallas import tpu as pltpu


def _sobel_kernel(x_ref, o_ref):
    """Sobel gradient magnitude on a block of B image planes.

    x_ref / o_ref: (B, H, W). padding=1 is emulated with zero-boundary
    shifts along H (sublane axis) and W (lane axis).
    """
    x = x_ref[...].astype(jnp.float32)
    B, H, W = x.shape

    zrow = jnp.zeros((B, 1, W), jnp.float32)
    zcol = jnp.zeros((B, H, 1), jnp.float32)

    # Row (sublane-axis) shifts with zero boundary.
    x_hp1 = jnp.concatenate([x[:, 1:, :], zrow], axis=1)   # x[h+1, w]
    x_hm1 = jnp.concatenate([zrow, x[:, :-1, :]], axis=1)  # x[h-1, w]

    # Separable vertical passes.
    s1 = x_hm1 + 2.0 * x + x_hp1   # vertical smoothing  -> gx after horiz diff
    s2 = x_hp1 - x_hm1             # vertical difference -> gy after horiz smooth

    # Column (lane-axis) shifts with zero boundary.
    s1_wp1 = jnp.concatenate([s1[:, :, 1:], zcol], axis=2)   # s1[h, w+1]
    s1_wm1 = jnp.concatenate([zcol, s1[:, :, :-1]], axis=2)  # s1[h, w-1]
    s2_wp1 = jnp.concatenate([s2[:, :, 1:], zcol], axis=2)
    s2_wm1 = jnp.concatenate([zcol, s2[:, :, :-1]], axis=2)

    # Sobel-x: [[-1,0,1],[-2,0,2],[-1,0,1]] (cross-correlation, as in conv2d)
    gx = s1_wp1 - s1_wm1
    # Sobel-y: [[-1,-2,-1],[0,0,0],[1,2,1]]
    gy = s2_wm1 + 2.0 * s2 + s2_wp1

    o_ref[...] = jnp.sqrt(gx * gx + gy * gy).astype(o_ref.dtype)


def _planes_per_block(num_planes, h, w, itemsize, budget_bytes=2 * 1024 * 1024):
    """Largest divisor of num_planes whose (B, H, W) block fits the VMEM
    budget (input block; temporaries/double-buffering covered by the margin),
    while keeping at least 2 grid steps for v7x megacore sharding."""
    plane_bytes = max(1, h * w * itemsize)
    cap = max(1, budget_bytes // plane_bytes)
    if num_planes >= 2:
        cap = min(cap, num_planes // 2)
    cap = min(cap, num_planes)
    best = 1
    for b in range(1, cap + 1):
        if num_planes % b == 0:
            best = b
    return best


def sobel_heuristic_block(x):
    """x: (N, C, H, W) float -> sqrt(sobel_x(x)^2 + sobel_y(x)^2), depthwise,
    padding=1 (same semantics as the PyTorch SobelHeuristicBlock.forward)."""
    N, C, H, W = x.shape
    nc = N * C
    xf = x.reshape(nc, H, W)  # contiguous reshape: no extra HBM pass

    B = _planes_per_block(nc, H, W, x.dtype.itemsize)
    grid = (nc // B,)

    # TODO(synk): for W << 128 one could pack several planes along the lane
    # axis (lane-dense stores) at the cost of an extra layout pass / in-kernel
    # masking at plane borders; not worth it at these small shapes.
    # TODO(synk): for very large planes (H*W*4 approaching VMEM), add an
    # H-band grid axis with a 2-row halo instead of whole-plane blocks.

    out = pl.pallas_call(
        _sobel_kernel,
        out_shape=jax.ShapeDtypeStruct((nc, H, W), x.dtype),
        grid_spec=pltpu.PrefetchScalarGridSpec(
            num_scalar_prefetch=0,
            grid=grid,
            in_specs=[pl.BlockSpec((B, H, W), lambda i: (i, 0, 0))],
            out_specs=pl.BlockSpec((B, H, W), lambda i: (i, 0, 0)),
        ),
        compiler_params=pltpu.CompilerParams(
            dimension_semantics=("parallel",),
            vmem_limit_bytes=48 * 1024 * 1024,  # safe on v7x (64 MiB/TC) too
        ),
    )(xf)

    return out.reshape(N, C, H, W)


def _reference(x):
    """Pure-JAX reference (depthwise conv via lax.conv_general_dilated)."""
    N, C, H, W = x.shape
    sobel_x = jnp.array([[-1, 0, 1], [-2, 0, 2], [-1, 0, 1]], jnp.float32)
    sobel_y = jnp.array([[-1, -2, -1], [0, 0, 0], [1, 2, 1]], jnp.float32)
    wx = jnp.tile(sobel_x[None, None], (C, 1, 1, 1))  # (C,1,3,3)
    wy = jnp.tile(sobel_y[None, None], (C, 1, 1, 1))
    dn = jax.lax.conv_dimension_numbers(x.shape, wx.shape,
                                        ("NCHW", "OIHW", "NCHW"))
    gx = jax.lax.conv_general_dilated(x, wx, (1, 1), ((1, 1), (1, 1)),
                                      dimension_numbers=dn,
                                      feature_group_count=C)
    gy = jax.lax.conv_general_dilated(x, wy, (1, 1), ((1, 1), (1, 1)),
                                      dimension_numbers=dn,
                                      feature_group_count=C)
    return jnp.sqrt(gx ** 2 + gy ** 2)


if __name__ == "__main__":
    key = jax.random.PRNGKey(0)
    x = jax.random.normal(key, (2, 4, 16, 16), dtype=jnp.float32)

    out = sobel_heuristic_block(x)
    out = jax.block_until_ready(out)

    ref = jax.block_until_ready(_reference(x))
    assert out.shape == ref.shape and out.dtype == ref.dtype
    assert jnp.allclose(out, ref, atol=1e-4, rtol=1e-4)

    print("KERNEL_OK")
</pallas_src>

<mosaic_0001>
module attributes {stable_mosaic.version = 11 : i64} {
  func.func @_sobel_kernel(%arg0: i32, %arg1: memref<4x16x16xf32, #tpu.memory_space<vmem>>, %arg2: memref<4x16x16xf32, #tpu.memory_space<vmem>>) attributes {dimension_semantics = [#tpu.dimension_semantics<parallel>], iteration_bounds = array<i64: 2>, scalar_prefetch = 0 : i64, scratch_operands = 0 : i64, tpu.core_type = #tpu.core_type<tc>, window_params = [{transform_indices = @transform_0, window_bounds = array<i64: 4, 16, 16>}, {transform_indices = @transform_1, window_bounds = array<i64: 4, 16, 16>}]} {
    %c0 = arith.constant 0 : index
    %c0_0 = arith.constant 0 : index
    %c0_1 = arith.constant 0 : index
    %0 = vector.load %arg1[%c0, %c0_0, %c0_1] : memref<4x16x16xf32, #tpu.memory_space<vmem>>, vector<4x16x16xf32>
    %cst = arith.constant 0.000000e+00 : f32
    %1 = vector.broadcast %cst : f32 to vector<4x1x16xf32>
    %cst_2 = arith.constant 0.000000e+00 : f32
    %2 = vector.broadcast %cst_2 : f32 to vector<4x16x1xf32>
    %3 = vector.extract_strided_slice %0 {offsets = [0, 1, 0], sizes = [4, 15, 16], strides = [1, 1, 1]} : vector<4x16x16xf32> to vector<4x15x16xf32>
    %4 = tpu.concatenate %3, %1 in 1 : vector<4x15x16xf32>, vector<4x1x16xf32> -> vector<4x16x16xf32>
    %5 = vector.extract_strided_slice %0 {offsets = [0, 0, 0], sizes = [4, 15, 16], strides = [1, 1, 1]} : vector<4x16x16xf32> to vector<4x15x16xf32>
    %6 = tpu.concatenate %1, %5 in 1 : vector<4x1x16xf32>, vector<4x15x16xf32> -> vector<4x16x16xf32>
    %cst_3 = arith.constant 2.000000e+00 : f32
    %7 = vector.broadcast %cst_3 : f32 to vector<4x16x16xf32>
    %8 = arith.mulf %7, %0 : vector<4x16x16xf32>
    %9 = arith.addf %6, %8 : vector<4x16x16xf32>
    %10 = arith.addf %9, %4 : vector<4x16x16xf32>
    %11 = arith.subf %4, %6 : vector<4x16x16xf32>
    %12 = vector.extract_strided_slice %10 {offsets = [0, 0, 1], sizes = [4, 16, 15], strides = [1, 1, 1]} : vector<4x16x16xf32> to vector<4x16x15xf32>
    %13 = tpu.concatenate %12, %2 in 2 : vector<4x16x15xf32>, vector<4x16x1xf32> -> vector<4x16x16xf32>
    %14 = vector.extract_strided_slice %10 {offsets = [0, 0, 0], sizes = [4, 16, 15], strides = [1, 1, 1]} : vector<4x16x16xf32> to vector<4x16x15xf32>
    %15 = tpu.concatenate %2, %14 in 2 : vector<4x16x1xf32>, vector<4x16x15xf32> -> vector<4x16x16xf32>
    %16 = vector.extract_strided_slice %11 {offsets = [0, 0, 1], sizes = [4, 16, 15], strides = [1, 1, 1]} : vector<4x16x16xf32> to vector<4x16x15xf32>
    %17 = tpu.concatenate %16, %2 in 2 : vector<4x16x15xf32>, vector<4x16x1xf32> -> vector<4x16x16xf32>
    %18 = vector.extract_strided_slice %11 {offsets = [0, 0, 0], sizes = [4, 16, 15], strides = [1, 1, 1]} : vector<4x16x16xf32> to vector<4x16x15xf32>
    %19 = tpu.concatenate %2, %18 in 2 : vector<4x16x1xf32>, vector<4x16x15xf32> -> vector<4x16x16xf32>
    %20 = arith.subf %13, %15 : vector<4x16x16xf32>
    %cst_4 = arith.constant 2.000000e+00 : f32
    %21 = vector.broadcast %cst_4 : f32 to vector<4x16x16xf32>
    %22 = arith.mulf %21, %11 : vector<4x16x16xf32>
    %23 = arith.addf %19, %22 : vector<4x16x16xf32>
    %24 = arith.addf %23, %17 : vector<4x16x16xf32>
    %25 = arith.mulf %20, %20 : vector<4x16x16xf32>
    %26 = arith.mulf %24, %24 : vector<4x16x16xf32>
    %27 = arith.addf %25, %26 : vector<4x16x16xf32>
    %28 = math.sqrt %27 : vector<4x16x16xf32>
    %c0_5 = arith.constant 0 : index
    %c0_6 = arith.constant 0 : index
    %c0_7 = arith.constant 0 : index
    %29 = vector.load %arg2[%c0_5, %c0_6, %c0_7] : memref<4x16x16xf32, #tpu.memory_space<vmem>>, vector<4x16x16xf32>
    tpu.vector_store %arg2[%c0_5, %c0_6, %c0_7], %28 {strides = array<i32>} : memref<4x16x16xf32, #tpu.memory_space<vmem>>, vector<4x16x16xf32>,
    return
  }
  func.func @transform_0(%arg0: i32) -> (i32, i32, i32) {
    %c0_i32 = arith.constant 0 : i32
    %c0_i32_0 = arith.constant 0 : i32
    %c0_i32_1 = arith.constant 0 : i32
    return %arg0, %c0_i32, %c0_i32_0 : i32, i32, i32
  }
  func.func @transform_1(%arg0: i32) -> (i32, i32, i32) {
    %c0_i32 = arith.constant 0 : i32
    %c0_i32_0 = arith.constant 0 : i32
    %c0_i32_1 = arith.constant 0 : i32
    return %arg0, %c0_i32, %c0_i32_0 : i32, i32, i32
  }
}

</mosaic_0001>

<llo_original>
// kernel: tpu_custom_call.1
$region0: #{tpu_custom_call.1}
  #allocation0 [shape = 'u32[]', space=smem, size = 0x4, offset = 0x4, fixed_abs, tag = 'smem constant byte address 0x4 - core index']
  #allocation1 [shape = 'u32[72,128]{1,0:T(1,128)}', space=vmem, size = 0x9000, scoped, tag = 'internal scratch']
  %s0 = inlined_call_operand.hbm [shape: f32[8,16,16], index: 0, kind: input, shape index: {}]
  %s1 = inlined_call_operand.hbm [shape: f32[8,16,16], index: 1, kind: output, shape index: {}]
  %s2 = sld [smem:[#allocation0]]
  $region41: #{tpu_custom_call.1} parent=0
    _
  %s4 = ssub.s32 1, %s2
  %s5 = scalar_select 0, %s4, %s2
  $region1: #{tpu_custom_call.1} parent=0
    #allocation2 [shape = 'u8[65536]{0}', space=vmem, size = 0x10000, scoped, tag = 'input window, operand 0']
    #allocation3 [shape = 's32[2]{0}', space=sflag, size = 0x8, scoped, tag = 'scoped memory for tpu_custom_call.1']
    #allocation4 [shape = 's32[2]{0}', space=sflag, size = 0x8, scoped, tag = 'scoped memory for tpu_custom_call.1']
    #allocation5 [shape = 'u8[65536]{0}', space=vmem, size = 0x10000, scoped, tag = 'output window, operand 0']
    %6 = vsyncpa [#allocation3], 0
    %s7 = scalar_lea.sflag [#allocation3], 1
    %8 = vsyncpa %s7, 0
    %9 = vsyncpa [#allocation4], 0
    %s10 = scalar_lea.sflag [#allocation4], 1
    %11 = vsyncpa %s10, 0
    loop: start=0, step=1, limit=4
    $region2: #{tpu_custom_call.1} parent=1 // loop_pre_header
      _
    $region3: #{tpu_custom_call.1} parent=1 // loop_header
      %s13 = sphi 0, %s17
      %p14 = scmp.ge.s32.totalorder %s13, 4
      %s23 = sphi 0, %s25
      %s26 = sphi 0, %s23
      %s27 = sphi 0, %s26
      %s43 = sphi 0, %s27
      %s49 = sphi 0, %s51
      %s52 = sphi 0, %s49
      %s53 = sphi 0, %s52
      %s69 = sphi 0, %s53
    $region4: #{tpu_custom_call.1} parent=1 // loop_header_branch
      %16 = sbr.rel (%p14) target = $region8
    $region5: #{tpu_custom_call.1} parent=1 // loop_body
      %s18 = ssub.s32 %s13, 1
      %s19 = ssub.s32 %s13, 2
      %s20 = sadd.s32 %s13, 1
      %s21 = ssub.s32 %s13, %s20
      %p22 = scmp.eq.s32.totalorder %s21, 0
      %s24 = sadd.s32 %s23, 1
      %s25 = scalar_select %p22, %s23, %s24
      %p28 = pneg %p22
      %p29 = scmp.eq.s32.totalorder %s13, 1
      %p30 = por %p28, %p29
      %p31 = scmp.ne.s32.totalorder %s23, %s26
      %p32 = scmp.eq.s32.totalorder %s13, 0
      %p33 = por %p31, %p32
      %p34 = scmp.ne.s32.totalorder %s23, %s26
      %p35 = scmp.eq.s32.totalorder %s18, 1
      %p36 = por %p34, %p35
      %p37 = scmp.ne.s32.totalorder %s26, %s27
      %p38 = scmp.eq.s32.totalorder %s18, 0
      %p39 = por %p37, %p38
      %p40 = scmp.ne.s32.totalorder %s26, %s27
      %p41 = scmp.eq.s32.totalorder %s19, 1
      %p42 = por %p40, %p41
      %p44 = scmp.ne.s32.totalorder %s27, %s43
      %p45 = scmp.eq.s32.totalorder %s19, 0
      %p46 = por %p44, %p45
      %s47 = ssub.s32 %s13, %s20
      %p48 = scmp.eq.s32.totalorder %s47, 0
      %s50 = sadd.s32 %s49, 1
      %s51 = scalar_select %p48, %s49, %s50
      %p54 = pneg %p48
      %p55 = scmp.eq.s32.totalorder %s13, 1
      %p56 = por %p54, %p55
      %p57 = scmp.ne.s32.totalorder %s49, %s52
      %p58 = scmp.eq.s32.totalorder %s13, 0
      %p59 = por %p57, %p58
      %p60 = scmp.ne.s32.totalorder %s49, %s52
      %p61 = scmp.eq.s32.totalorder %s18, 1
      %p62 = por %p60, %p61
      %p63 = scmp.ne.s32.totalorder %s52, %s53
      %p64 = scmp.eq.s32.totalorder %s18, 0
      %p65 = por %p63, %p64
      %p66 = scmp.ne.s32.totalorder %s52, %s53
      %p67 = scmp.eq.s32.totalorder %s19, 1
      %p68 = por %p66, %p67
      %p70 = scmp.ne.s32.totalorder %s53, %s69
      %p71 = scmp.eq.s32.totalorder %s19, 0
      %p72 = por %p70, %p71
      %p73 = scmp.le.s32.totalorder 1, %s13
      %p74 = scmp.lt.s32.totalorder %s13, 3
      %p75 = pnand %p73, %p74
      %p76 = pneg %p75
      // Predicated region
      $region9: #{tpu_custom_call.1} parent=5 // pred_check
        _
      $region10: #{tpu_custom_call.1} parent=5 // pred_check_branch
        %78 = sbr.rel (%p75) target = $region12
      $region11: #{tpu_custom_call.1} parent=5 // pred_region
        %s79 = ssub.s32 %s13, 1
      $region12: #{tpu_custom_call.1} parent=5 // pred_fallthru
        _
      %p80 = scmp.lt.s32.totalorder %s13, 2
      // Predicated region
      $region13: #{tpu_custom_call.1} parent=5 // pred_check
        %p81 = pneg %p80
      $region14: #{tpu_custom_call.1} parent=5 // pred_check_branch
        %83 = sbr.rel (%p81) target = $region16
      $region15: #{tpu_custom_call.1} parent=5 // pred_region
        // Predicated region
        $region17: #{tpu_custom_call.1} parent=15 // pred_check
          %p84 = pneg %p33
        $region18: #{tpu_custom_call.1} parent=15 // pred_check_branch
          %86 = sbr.rel (%p84) target = $region20
        $region19: #{tpu_custom_call.1} parent=15 // pred_region
          %s87 = sand.u32 %s23, 1
          %s88 = scalar_lea.sflag [#allocation3], %s87
          %s89 = sand.u32 %s23, 1
          %s90 = smul.addr %s89, 64
          %s91 = scalar_lea.vmem [#allocation2], %s90
          %s92 = smul.u32 4, %s13
          %94 = vsyncadd %s88, 0
          %s95 = smul.addr %s92, 2
          %s96 = smul.addr %s95, 8
          %s97 = scalar_lea.hbm %s0, %s96
          %s98 = sshll.u32 %s97, 4
          %s99 = int_to_ptr.hbm [resolvable:$true] %s98
          %s100 = sshll.u32 %s91, 4
          %s101 = int_to_ptr.vmem [resolvable:$true] %s100
          %106 = dma.hbm_to_vmem [thread:$0]  %s99, 1024, %s101, %s88, 128, 128, 8
        $region20: #{tpu_custom_call.1} parent=15 // pred_fallthru
          _
      $region16: #{tpu_custom_call.1} parent=5 // pred_fallthru
        _
      %p107 = scmp.le.s32.totalorder 1, %s13
      %p108 = scmp.lt.s32.totalorder %s13, 3
      %p109 = pnand %p107, %p108
      %p110 = pneg %p109
      // Predicated region
      $region21: #{tpu_custom_call.1} parent=5 // pred_check
        _
      $region22: #{tpu_custom_call.1} parent=5 // pred_check_branch
        %112 = sbr.rel (%p109) target = $region24
      $region23: #{tpu_custom_call.1} parent=5 // pred_region
        %s113 = ssub.s32 %s13, 1
        %s114 = sand.u32 %s26, 1
        %s115 = scalar_lea.sflag [#allocation3], %s114
        %s116 = sand.u32 %s26, 1
        %s117 = smul.addr %s116, 64
        %s118 = scalar_lea.vmem [#allocation2], %s117
        // Predicated region
        $region25: #{tpu_custom_call.1} parent=23 // pred_check
          %p119 = pneg %p39
        $region26: #{tpu_custom_call.1} parent=23 // pred_check_branch
          %121 = sbr.rel (%p119) target = $region28
        $region27: #{tpu_custom_call.1} parent=23 // pred_region
          %123 = dma.done %s115, 1024
        $region28: #{tpu_custom_call.1} parent=23 // pred_fallthru
          _
        %s124 = sand.u32 %s26, 1
        %s125 = scalar_lea.sflag [#allocation3], %s124
        %s126 = sand.u32 %s26, 1
        %s127 = smul.addr %s126, 64
        %s128 = scalar_lea.vmem [#allocation2], %s127
        %p129 = pneg %p39
        %p130 = pneg %p36
        %p131 = pneg %p65
        %p132 = pneg %p62
        %s133 = sand.u32 %s52, 1
        %s134 = scalar_lea.sflag [#allocation4], %s133
        %s135 = sand.u32 %s52, 1
        %s136 = smul.addr %s135, 64
        %s137 = scalar_lea.vmem [#allocation5], %s136
        %s138 = smul.u32 4, %s18
        %s139 = smul.u32 4, %s18
        %v140 = vld [vmem:[%s118] sm:$0xff]
        %v141 = vld [vmem:[%s118 + $0x8] sm:$0xff]
        %v142 = vld [vmem:[%s118 + $0x10] sm:$0xff]
        %v143 = vld [vmem:[%s118 + $0x18] sm:$0xff]
        %v144 = vld [vmem:[%s118 + $0x20] sm:$0xff]
        %v145 = vld [vmem:[%s118 + $0x28] sm:$0xff]
        %v146 = vld [vmem:[%s118 + $0x30] sm:$0xff]
        %v147 = vld [vmem:[%s118 + $0x38] sm:$0xff]
        %vm156 = vcmask 1046528
        %v157 = vrot.slane %v140, 1
        %v158 = vrot.slane %v141, 1
        %v159 = vsel %vm156, %v157, %v158
        %v160 = vrot.slane %v142, 1
        %v161 = vrot.slane %v143, 1
        %v162 = vsel %vm156, %v160, %v161
        %v163 = vrot.slane %v144, 1
        %v164 = vrot.slane %v145, 1
        %v165 = vsel %vm156, %v163, %v164
        %v166 = vrot.slane %v146, 1
        %v167 = vrot.slane %v147, 1
        %v168 = vsel %vm156, %v166, %v167
        %v177 = vsel %vm156, %v158, 0.0
        %v178 = vsel %vm156, %v161, 0.0
        %v179 = vsel %vm156, %v164, 0.0
        %v180 = vsel %vm156, %v167, 0.0
        %vm181 = vcmask 1040384
        %v182 = vrot.slane %v140, 7
        %v183 = vrot.slane %v141, 7
        %v184 = vsel %vm181, %v182, %v183
        %v185 = vrot.slane %v142, 7
        %v186 = vrot.slane %v143, 7
        %v187 = vsel %vm181, %v185, %v186
        %v188 = vrot.slane %v144, 7
        %v189 = vrot.slane %v145, 7
        %v190 = vsel %vm181, %v188, %v189
        %v191 = vrot.slane %v146, 7
        %v192 = vrot.slane %v147, 7
        %v193 = vsel %vm181, %v191, %v192
        %v202 = vsel %vm181, 0.0, %v182
        %v203 = vsel %vm181, 0.0, %v185
        %v204 = vsel %vm181, 0.0, %v188
        %v205 = vsel %vm181, 0.0, %v191
        %v206 = vmul.f32 %v140, 2.0
        %v207 = vmul.f32 %v141, 2.0
        %v208 = vmul.f32 %v142, 2.0
        %v209 = vmul.f32 %v143, 2.0
        %v210 = vmul.f32 %v144, 2.0
        %v211 = vmul.f32 %v145, 2.0
        %v212 = vmul.f32 %v146, 2.0
        %v213 = vmul.f32 %v147, 2.0
        %v214 = vadd.f32 %v202, %v206
        %v215 = vadd.f32 %v184, %v207
        %v216 = vadd.f32 %v203, %v208
        %v217 = vadd.f32 %v187, %v209
        %v218 = vadd.f32 %v204, %v210
        %v219 = vadd.f32 %v190, %v211
        %v220 = vadd.f32 %v205, %v212
        %v221 = vadd.f32 %v193, %v213
        %v222 = vadd.f32 %v214, %v159
        %v223 = vadd.f32 %v215, %v177
        %v224 = vadd.f32 %v216, %v162
        %v225 = vadd.f32 %v217, %v178
        %v226 = vadd.f32 %v218, %v165
        %v227 = vadd.f32 %v219, %v179
        %v228 = vadd.f32 %v220, %v168
        %v229 = vadd.f32 %v221, %v180
        %v230 = vsub.f32 %v159, %v202
        %v231 = vsub.f32 %v177, %v184
        %v232 = vsub.f32 %v162, %v203
        %v233 = vsub.f32 %v178, %v187
        %v234 = vsub.f32 %v165, %v204
        %v235 = vsub.f32 %v179, %v190
        %v236 = vsub.f32 %v168, %v205
        %v237 = vsub.f32 %v180, %v193
        %246 = vrot.lane.b32.xlu0 %v222, 127
        %v247 = vpop.permute.xlu0 %246
        %248 = vrot.lane.b32.xlu0 %v223, 127
        %v249 = vpop.permute.xlu0 %248
        %250 = vrot.lane.b32.xlu0 %v224, 127
        %v251 = vpop.permute.xlu0 %250
        %252 = vrot.lane.b32.xlu0 %v225, 127
        %v253 = vpop.permute.xlu0 %252
        %254 = vrot.lane.b32.xlu0 %v226, 127
        %v255 = vpop.permute.xlu0 %254
        %256 = vrot.lane.b32.xlu0 %v227, 127
        %v257 = vpop.permute.xlu0 %256
        %258 = vrot.lane.b32.xlu0 %v228, 127
        %v259 = vpop.permute.xlu0 %258
        %260 = vrot.lane.b32.xlu0 %v229, 127
        %v261 = vpop.permute.xlu0 %260
        %vm270 = vcmask 121856
        %v271 = vsel %vm270, %v247, 0.0
        %v272 = vsel %vm270, %v249, 0.0
        %v273 = vsel %vm270, %v251, 0.0
        %v274 = vsel %vm270, %v253, 0.0
        %v275 = vsel %vm270, %v255, 0.0
        %v276 = vsel %vm270, %v257, 0.0
        %v277 = vsel %vm270, %v259, 0.0
        %v278 = vsel %vm270, %v261, 0.0
        %279 = vrot.lane.b32.xlu0 %v222, 1
        %v280 = vpop.permute.xlu0 %279
        %281 = vrot.lane.b32.xlu0 %v223, 1
        %v282 = vpop.permute.xlu0 %281
        %283 = vrot.lane.b32.xlu0 %v224, 1
        %v284 = vpop.permute.xlu0 %283
        %285 = vrot.lane.b32.xlu0 %v225, 1
        %v286 = vpop.permute.xlu0 %285
        %287 = vrot.lane.b32.xlu0 %v226, 1
        %v288 = vpop.permute.xlu0 %287
        %289 = vrot.lane.b32.xlu0 %v227, 1
        %v290 = vpop.permute.xlu0 %289
        %291 = vrot.lane.b32.xlu0 %v228, 1
        %v292 = vpop.permute.xlu0 %291
        %293 = vrot.lane.b32.xlu0 %v229, 1
        %v294 = vpop.permute.xlu0 %293
        %vm303 = vcmask 7168
        %v304 = vsel %vm303, 0.0, %v280
        %v305 = vsel %vm303, 0.0, %v282
        %v306 = vsel %vm303, 0.0, %v284
        %v307 = vsel %vm303, 0.0, %v286
        %v308 = vsel %vm303, 0.0, %v288
        %v309 = vsel %vm303, 0.0, %v290
        %v310 = vsel %vm303, 0.0, %v292
        %v311 = vsel %vm303, 0.0, %v294
        %320 = vrot.lane.b32.xlu0 %v230, 127
        %v321 = vpop.permute.xlu0 %320
        %322 = vrot.lane.b32.xlu0 %v231, 127
        %v323 = vpop.permute.xlu0 %322
        %324 = vrot.lane.b32.xlu0 %v232, 127
        %v325 = vpop.permute.xlu0 %324
        %326 = vrot.lane.b32.xlu0 %v233, 127
        %v327 = vpop.permute.xlu0 %326
        %328 = vrot.lane.b32.xlu0 %v234, 127
        %v329 = vpop.permute.xlu0 %328
        %330 = vrot.lane.b32.xlu0 %v235, 127
        %v331 = vpop.permute.xlu0 %330
        %332 = vrot.lane.b32.xlu0 %v236, 127
        %v333 = vpop.permute.xlu0 %332
        %334 = vrot.lane.b32.xlu0 %v237, 127
        %v335 = vpop.permute.xlu0 %334
        %v344 = vsel %vm270, %v321, 0.0
        %v345 = vsel %vm270, %v323, 0.0
        %v346 = vsel %vm270, %v325, 0.0
        %v347 = vsel %vm270, %v327, 0.0
        %v348 = vsel %vm270, %v329, 0.0
        %v349 = vsel %vm270, %v331, 0.0
        %v350 = vsel %vm270, %v333, 0.0
        %v351 = vsel %vm270, %v335, 0.0
        %352 = vrot.lane.b32.xlu0 %v230, 1
        %v353 = vpop.permute.xlu0 %352
        %354 = vrot.lane.b32.xlu0 %v231, 1
        %v355 = vpop.permute.xlu0 %354
        %356 = vrot.lane.b32.xlu0 %v232, 1
        %v357 = vpop.permute.xlu0 %356
        %358 = vrot.lane.b32.xlu0 %v233, 1
        %v359 = vpop.permute.xlu0 %358
        %360 = vrot.lane.b32.xlu0 %v234, 1
        %v361 = vpop.permute.xlu0 %360
        %362 = vrot.lane.b32.xlu0 %v235, 1
        %v363 = vpop.permute.xlu0 %362
        %364 = vrot.lane.b32.xlu0 %v236, 1
        %v365 = vpop.permute.xlu0 %364
        %366 = vrot.lane.b32.xlu0 %v237, 1
        %v367 = vpop.permute.xlu0 %366
        %v376 = vsel %vm303, 0.0, %v353
        %v377 = vsel %vm303, 0.0, %v355
        %v378 = vsel %vm303, 0.0, %v357
        %v379 = vsel %vm303, 0.0, %v359
        %v380 = vsel %vm303, 0.0, %v361
        %v381 = vsel %vm303, 0.0, %v363
        %v382 = vsel %vm303, 0.0, %v365
        %v383 = vsel %vm303, 0.0, %v367
        %v384 = vsub.f32 %v271, %v304
        %v385 = vsub.f32 %v272, %v305
        %v386 = vsub.f32 %v273, %v306
        %v387 = vsub.f32 %v274, %v307
        %v388 = vsub.f32 %v275, %v308
        %v389 = vsub.f32 %v276, %v309
        %v390 = vsub.f32 %v277, %v310
        %v391 = vsub.f32 %v278, %v311
        %v392 = vmul.f32 %v230, 2.0
        %v393 = vmul.f32 %v231, 2.0
        %v394 = vmul.f32 %v232, 2.0
        %v395 = vmul.f32 %v233, 2.0
        %v396 = vmul.f32 %v234, 2.0
        %v397 = vmul.f32 %v235, 2.0
        %v398 = vmul.f32 %v236, 2.0
        %v399 = vmul.f32 %v237, 2.0
        %v400 = vadd.f32 %v376, %v392
        %v401 = vadd.f32 %v377, %v393
        %v402 = vadd.f32 %v378, %v394
        %v403 = vadd.f32 %v379, %v395
        %v404 = vadd.f32 %v380, %v396
        %v405 = vadd.f32 %v381, %v397
        %v406 = vadd.f32 %v382, %v398
        %v407 = vadd.f32 %v383, %v399
        %v408 = vadd.f32 %v400, %v344
        %v409 = vadd.f32 %v401, %v345
        %v410 = vadd.f32 %v402, %v346
        %v411 = vadd.f32 %v403, %v347
        %v412 = vadd.f32 %v404, %v348
        %v413 = vadd.f32 %v405, %v349
        %v414 = vadd.f32 %v406, %v350
        %v415 = vadd.f32 %v407, %v351
        %v416 = vmul.f32 %v384, %v384
        %v417 = vmul.f32 %v385, %v385
        %v418 = vmul.f32 %v386, %v386
        %v419 = vmul.f32 %v387, %v387
        %v420 = vmul.f32 %v388, %v388
        %v421 = vmul.f32 %v389, %v389
        %v422 = vmul.f32 %v390, %v390
        %v423 = vmul.f32 %v391, %v391
        %v424 = vmul.f32 %v408, %v408
        %v425 = vmul.f32 %v409, %v409
        %v426 = vmul.f32 %v410, %v410
        %v427 = vmul.f32 %v411, %v411
        %v428 = vmul.f32 %v412, %v412
        %v429 = vmul.f32 %v413, %v413
        %v430 = vmul.f32 %v414, %v414
        %v431 = vmul.f32 %v415, %v415
        %v432 = vadd.f32 %v416, %v424
        %v433 = vadd.f32 %v417, %v425
        %v434 = vadd.f32 %v418, %v426
        %v435 = vadd.f32 %v419, %v427
        %v436 = vadd.f32 %v420, %v428
        %v437 = vadd.f32 %v421, %v429
        %v438 = vadd.f32 %v422, %v430
        %v439 = vadd.f32 %v423, %v431
        %v440 = vrsqrt.pop %v432
        %v441 = vmul.f32 %v440, %v432
        %v442 = vmul.f32 %v441, %v440
        %v443 = vmul.f32 0.5, %v442
        %v444 = vsub.f32 1.5, %v443
        %v445 = vmul.f32 %v440, %v444
        %v446 = vmul.f32 %v432, %v445
        %vm447 = vcmp.eq.f32.partialorder %v432, inf
        %v448 = vsel %vm447, %v432, %v446
        %vm449 = vcmp.eq.f32.partialorder %v432, 0.0
        %v450 = vand.u32 %v432, 2147483648
        %v451 = vsel %vm449, %v450, %v448
        %v452 = vrsqrt.pop %v433
        %v453 = vmul.f32 %v452, %v433
        %v454 = vmul.f32 %v453, %v452
        %v455 = vmul.f32 0.5, %v454
        %v456 = vsub.f32 1.5, %v455
        %v457 = vmul.f32 %v452, %v456
        %v458 = vmul.f32 %v433, %v457
        %vm459 = vcmp.eq.f32.partialorder %v433, inf
        %v460 = vsel %vm459, %v433, %v458
        %vm461 = vcmp.eq.f32.partialorder %v433, 0.0
        %v462 = vand.u32 %v433, 2147483648
        %v463 = vsel %vm461, %v462, %v460
        %v464 = vrsqrt.pop %v434
        %v465 = vmul.f32 %v464, %v434
        %v466 = vmul.f32 %v465, %v464
        %v467 = vmul.f32 0.5, %v466
        %v468 = vsub.f32 1.5, %v467
        %v469 = vmul.f32 %v464, %v468
        %v470 = vmul.f32 %v434, %v469
        %vm471 = vcmp.eq.f32.partialorder %v434, inf
        %v472 = vsel %vm471, %v434, %v470
        %vm473 = vcmp.eq.f32.partialorder %v434, 0.0
        %v474 = vand.u32 %v434, 2147483648
        %v475 = vsel %vm473, %v474, %v472
        %v476 = vrsqrt.pop %v435
        %v477 = vmul.f32 %v476, %v435
        %v478 = vmul.f32 %v477, %v476
        %v479 = vmul.f32 0.5, %v478
        %v480 = vsub.f32 1.5, %v479
        %v481 = vmul.f32 %v476, %v480
        %v482 = vmul.f32 %v435, %v481
        %vm483 = vcmp.eq.f32.partialorder %v435, inf
        %v484 = vsel %vm483, %v435, %v482
        %vm485 = vcmp.eq.f32.partialorder %v435, 0.0
        %v486 = vand.u32 %v435, 2147483648
        %v487 = vsel %vm485, %v486, %v484
        %v488 = vrsqrt.pop %v436
        %v489 = vmul.f32 %v488, %v436
        %v490 = vmul.f32 %v489, %v488
        %v491 = vmul.f32 0.5, %v490
        %v492 = vsub.f32 1.5, %v491
        %v493 = vmul.f32 %v488, %v492
        %v494 = vmul.f32 %v436, %v493
        %vm495 = vcmp.eq.f32.partialorder %v436, inf
        %v496 = vsel %vm495, %v436, %v494
        %vm497 = vcmp.eq.f32.partialorder %v436, 0.0
        %v498 = vand.u32 %v436, 2147483648
        %v499 = vsel %vm497, %v498, %v496
        %v500 = vrsqrt.pop %v437
        %v501 = vmul.f32 %v500, %v437
        %v502 = vmul.f32 %v501, %v500
        %v503 = vmul.f32 0.5, %v502
        %v504 = vsub.f32 1.5, %v503
        %v505 = vmul.f32 %v500, %v504
        %v506 = vmul.f32 %v437, %v505
        %vm507 = vcmp.eq.f32.partialorder %v437, inf
        %v508 = vsel %vm507, %v437, %v506
        %vm509 = vcmp.eq.f32.partialorder %v437, 0.0
        %v510 = vand.u32 %v437, 2147483648
        %v511 = vsel %vm509, %v510, %v508
        %v512 = vrsqrt.pop %v438
        %v513 = vmul.f32 %v512, %v438
        %v514 = vmul.f32 %v513, %v512
        %v515 = vmul.f32 0.5, %v514
        %v516 = vsub.f32 1.5, %v515
        %v517 = vmul.f32 %v512, %v516
        %v518 = vmul.f32 %v438, %v517
        %vm519 = vcmp.eq.f32.partialorder %v438, inf
        %v520 = vsel %vm519, %v438, %v518
        %vm521 = vcmp.eq.f32.partialorder %v438, 0.0
        %v522 = vand.u32 %v438, 2147483648
        %v523 = vsel %vm521, %v522, %v520
        %v524 = vrsqrt.pop %v439
        %v525 = vmul.f32 %v524, %v439
        %v526 = vmul.f32 %v525, %v524
        %v527 = vmul.f32 0.5, %v526
        %v528 = vsub.f32 1.5, %v527
        %v529 = vmul.f32 %v524, %v528
        %v530 = vmul.f32 %v439, %v529
        %vm531 = vcmp.eq.f32.partialorder %v439, inf
        %v532 = vsel %vm531, %v439, %v530
        %vm533 = vcmp.eq.f32.partialorder %v439, 0.0
        %v534 = vand.u32 %v439, 2147483648
        %v535 = vsel %vm533, %v534, %v532
        %vm536 = vcmask 130048
        %537 = vst.msk [vmem:[%s137] sm:$0xff] %vm536, %v451
        %538 = vst.msk [vmem:[%s137 + $0x8] sm:$0xff] %vm536, %v463
        %539 = vst.msk [vmem:[%s137 + $0x10] sm:$0xff] %vm536, %v475
        %540 = vst.msk [vmem:[%s137 + $0x18] sm:$0xff] %vm536, %v487
        %541 = vst.msk [vmem:[%s137 + $0x20] sm:$0xff] %vm536, %v499
        %542 = vst.msk [vmem:[%s137 + $0x28] sm:$0xff] %vm536, %v511
        %543 = vst.msk [vmem:[%s137 + $0x30] sm:$0xff] %vm536, %v523
        %544 = vst.msk [vmem:[%s137 + $0x38] sm:$0xff] %vm536, %v535
        %s545 = sand.u32 %s52, 1
        %s546 = scalar_lea.sflag [#allocation4], %s545
        %s547 = sand.u32 %s52, 1
        %s548 = smul.addr %s547, 64
        %s549 = scalar_lea.vmem [#allocation5], %s548
        // Predicated region
        $region29: #{tpu_custom_call.1} parent=23 // pred_check
          %p550 = pneg %p62
        $region30: #{tpu_custom_call.1} parent=23 // pred_check_branch
          %552 = sbr.rel (%p550) target = $region32
        $region31: #{tpu_custom_call.1} parent=23 // pred_region
          %s553 = smul.u32 4, %s18
          %555 = vsyncadd %s546, 0
          %s556 = smul.addr %s553, 2
          %s557 = smul.addr %s556, 8
          %s558 = scalar_lea.hbm %s1, %s557
          %s559 = sshll.u32 %s549, 4
          %s560 = int_to_ptr.vmem [resolvable:$true] %s559
          %s561 = sshll.u32 %s558, 4
          %s562 = int_to_ptr.hbm [resolvable:$true] %s561
          %567 = dma.vmem_to_hbm [thread:$0]  %s560, 1024, %s562, %s546, 128, 128, 8
        $region32: #{tpu_custom_call.1} parent=23 // pred_fallthru
          _
      $region24: #{tpu_custom_call.1} parent=5 // pred_fallthru
        _
      %p568 = scmp.le.s32.totalorder 2, %s13
      // Predicated region
      $region33: #{tpu_custom_call.1} parent=5 // pred_check
        %p569 = pneg %p568
      $region34: #{tpu_custom_call.1} parent=5 // pred_check_branch
        %571 = sbr.rel (%p569) target = $region36
      $region35: #{tpu_custom_call.1} parent=5 // pred_region
        %s572 = ssub.s32 %s13, 2
        // Predicated region
        $region37: #{tpu_custom_call.1} parent=35 // pred_check
          %p573 = pneg %p68
        $region38: #{tpu_custom_call.1} parent=35 // pred_check_branch
          %575 = sbr.rel (%p573) target = $region40
        $region39: #{tpu_custom_call.1} parent=35 // pred_region
          %s576 = sand.u32 %s53, 1
          %s577 = scalar_lea.sflag [#allocation4], %s576
          %s578 = sand.u32 %s53, 1
          %s579 = smul.addr %s578, 64
          %s580 = scalar_lea.vmem [#allocation5], %s579
          %582 = dma.done %s577, 1024
        $region40: #{tpu_custom_call.1} parent=35 // pred_fallthru
          _
      $region36: #{tpu_custom_call.1} parent=5 // pred_fallthru
        _
    $region6: #{tpu_custom_call.1} parent=1 // loop_footer
      %s17 = sadd.s32 1, %s13
    $region7: #{tpu_custom_call.1} parent=1 // loop_footer_branch
      %12 = sbr.rel target = $region3
    $region8: #{tpu_custom_call.1} parent=1 // loop_exit
      _
    %583 = vsyncpa [#allocation3], 1
    %s584 = scalar_lea.sflag [#allocation3], 1
    %585 = vsyncpa %s584, 1
    %586 = vsyncpa [#allocation4], 1
    %s587 = scalar_lea.sflag [#allocation4], 1
    %588 = vsyncpa %s587, 1

</llo_original>
